<compile_context>
chip_gen: v7x
topology: tpu7x:2x2x1
jax: 0.10.0
libtpu: 0.0.40
codegen_flags: <defaults>
</compile_context>

<pallas_src>
import functools

import jax
import jax.numpy as jnp
from jax.experimental import pallas as pl
from jax.experimental.pallas import tpu as pltpu


_SUBLANE = 8
_MIB = 1024 * 1024


def _cdiv(a: int, b: int) -> int:
    return -(-a // b)


def _round_up(a: int, b: int) -> int:
    return _cdiv(a, b) * b


def _tpu_vmem_capacity() -> int:
    """Physical VMEM per TensorCore; falls back to the v5e/v6e value."""
    try:
        return int(pltpu.get_tpu_info().vmem_capacity_bytes)
    except Exception:
        return 128 * _MIB


def _pick_row_tile(rows: int, d_model: int, in_dtype_bytes: int,
                   vmem_cap: int, two_tensorcores: bool) -> int:
    """Largest sublane-aligned row tile that fits the generation-aware VMEM
    budget.  On v7x (2 TensorCores share the 'parallel' grid axis) prefer an
    even step count; on v5e/v6e just take the biggest tile."""
    if rows <= _SUBLANE:
        return rows  # block equals the full row extent; always legal
    # Per-row live bytes: double-buffered in + out I/O tiles (input dtype) plus
    # ~2 f32 intermediates inside the body (the cast of x and the pre-store y).
    per_row = 2 * 2 * d_model * in_dtype_bytes + 2 * d_model * 4
    # Generous budget on 128 MiB chips (v5e/v6e), tighter on v7x (64 MiB).
    tile_budget = min(48 * _MIB, vmem_cap // 2)
    row_cap = 1024 if two_tensorcores else 2048
    tm = tile_budget // per_row
    tm = max(_SUBLANE, min(tm, row_cap, rows))
    tm -= tm % _SUBLANE
    if two_tensorcores:
        steps = _cdiv(rows, tm)
        if steps == 1 and rows >= 2 * _SUBLANE:
            # Split so both v7x TensorCores get work.
            tm = _round_up(_cdiv(rows, 2), _SUBLANE)
        elif steps > 1 and steps % 2 == 1:
            # Nudge toward an even grid when it barely shrinks the tile.
            alt = _round_up(_cdiv(rows, steps + 1), _SUBLANE)
            if alt >= _SUBLANE and _cdiv(rows, alt) % 2 == 0:
                tm = alt
    return tm


def _rmsnorm_kernel(x_ref, w_ref, o_ref, *, eps: float, d_model: int):
    # x_ref: (TM, D) row tile; w_ref: (1, D) pre-cast f32 weights; o_ref: (TM, D).
    x = x_ref[...].astype(jnp.float32)
    # Matches the PyTorch module exactly: rms = sqrt((sum(x^2) + eps) / d_model).
    ss = jnp.sum(x * x, axis=-1, keepdims=True)        # (TM, 1)
    inv = jax.lax.rsqrt((ss + eps) / d_model)          # per-row rsqrt -> EUP, off the VPU path
    o_ref[...] = ((x * inv) * w_ref[...]).astype(o_ref.dtype)


def rms_layer_norm(x: jax.Array, weights: jax.Array, eps: float) -> jax.Array:
    """RMSLayerNorm forward. x: (B, S, D); weights: (D,). Returns same shape/dtype as x."""
    B, S, D = x.shape
    in_dtype = x.dtype
    rows = B * S

    # Flatten (B, S, D) -> (rows, D); a free view, no HBM copy.  The feature
    # axis uses a full-extent block (== D), so no wrapper pad / slice is needed
    # even when D is not a multiple of 128.
    x2d = x.reshape(rows, D)
    # Hoisted weight cast: the (1, D) block is grid-invariant, DMA'd once.
    w_f32 = weights.astype(jnp.float32).reshape(1, D)

    vmem_cap = _tpu_vmem_capacity()
    # v7x is the only generation with <= 64 MiB VMEM per TC; it also has the
    # 2 TensorCores that shard the 'parallel' grid axis.
    two_tc = vmem_cap <= 96 * _MIB
    in_bytes = jnp.dtype(in_dtype).itemsize

    tm = _pick_row_tile(rows, D, in_bytes, vmem_cap, two_tc)
    n_steps = _cdiv(rows, tm)  # ragged last block is fine: rows are independent

    # Scoped VMEM: double-buffered I/O tiles + weight + in-kernel f32 working
    # set, with 1.5x headroom, capped at 75% of this generation's physical VMEM.
    tile_io_bytes = 2 * 2 * tm * D * in_bytes + 2 * D * 4
    body_f32_bytes = 2 * tm * D * 4
    need = tile_io_bytes + body_f32_bytes
    vmem_limit = int(min(max(need + need // 2, 16 * _MIB), (vmem_cap * 3) // 4))

    kernel = functools.partial(_rmsnorm_kernel, eps=float(eps), d_model=int(D))

    out2d = pl.pallas_call(
        kernel,
        out_shape=jax.ShapeDtypeStruct((rows, D), in_dtype),
        grid_spec=pltpu.PrefetchScalarGridSpec(
            num_scalar_prefetch=0,
            grid=(n_steps,),
            in_specs=[
                pl.BlockSpec((tm, D), lambda i: (i, 0)),
                pl.BlockSpec((1, D), lambda i: (0, 0)),
            ],
            out_specs=pl.BlockSpec((tm, D), lambda i: (i, 0)),
        ),
        compiler_params=pltpu.CompilerParams(
            dimension_semantics=("parallel",),
            vmem_limit_bytes=vmem_limit,
        ),
    )(x2d, w_f32)

    return out2d.reshape(B, S, D)


if __name__ == "__main__":
    # Small shapes consistent with the module's forward: (batch, seq, d_model)
    batch, seq, d_model = 2, 8, 32
    eps = 1e-5

    key = jax.random.PRNGKey(0)
    kx, kw = jax.random.split(key)
    x = jax.random.normal(kx, (batch, seq, d_model), dtype=jnp.float32)
    # Deterministic synthetic weights (the module takes them as a ctor arg).
    weights = jax.random.normal(kw, (d_model,), dtype=jnp.float32)

    out = rms_layer_norm(x, weights, eps)
    jax.block_until_ready(out)

    # Reference check in plain JAX (same math as the PyTorch module).
    xf = x.astype(jnp.float32)
    rms = jnp.sqrt((jnp.sum(xf * xf, axis=-1, keepdims=True) + eps) / d_model)
    ref = ((xf / rms) * weights[None, None, :]).astype(x.dtype)
    assert out.shape == x.shape and out.dtype == x.dtype
    assert jnp.allclose(out, ref, atol=2e-5, rtol=2e-5)

    print("KERNEL_OK")
</pallas_src>

<mosaic_0001>
module attributes {stable_mosaic.version = 11 : i64} {
  func.func @_rmsnorm_kernel(%arg0: i32, %arg1: memref<16x32xf32, #tpu.memory_space<vmem>>, %arg2: memref<1x32xf32, #tpu.memory_space<vmem>>, %arg3: memref<16x32xf32, #tpu.memory_space<vmem>>) attributes {dimension_semantics = [#tpu.dimension_semantics<parallel>], iteration_bounds = array<i64: 1>, scalar_prefetch = 0 : i64, scratch_operands = 0 : i64, tpu.core_type = #tpu.core_type<tc>, window_params = [{transform_indices = @transform_0, window_bounds = array<i64: 16, 32>}, {pipeline_mode = #tpu.pipeline_mode<synchronous>, transform_indices = @transform_1, window_bounds = array<i64: 1, 32>}, {transform_indices = @transform_2, window_bounds = array<i64: 16, 32>}]} {
    %c0 = arith.constant 0 : index
    %c0_0 = arith.constant 0 : index
    %0 = vector.load %arg1[%c0, %c0_0] : memref<16x32xf32, #tpu.memory_space<vmem>>, vector<16x32xf32>
    %1 = arith.mulf %0, %0 : vector<16x32xf32>
    %cst = arith.constant dense<0.000000e+00> : vector<16xf32>
    %2 = vector.multi_reduction <add>, %1, %cst [1] : vector<16x32xf32> to vector<16xf32>
    %3 = vector.shape_cast %2 : vector<16xf32> to vector<16x1xf32>
    %cst_1 = arith.constant 9.99999974E-6 : f32
    %4 = vector.broadcast %cst_1 : f32 to vector<16x1xf32>
    %5 = arith.addf %3, %4 : vector<16x1xf32>
    %cst_2 = arith.constant 3.200000e+01 : f32
    %6 = vector.broadcast %cst_2 : f32 to vector<16x1xf32>
    %7 = arith.divf %5, %6 : vector<16x1xf32>
    %8 = math.rsqrt %7 : vector<16x1xf32>
    %9 = vector.broadcast %8 : vector<16x1xf32> to vector<16x32xf32>
    %10 = arith.mulf %0, %9 : vector<16x32xf32>
    %c0_3 = arith.constant 0 : index
    %c0_4 = arith.constant 0 : index
    %11 = vector.load %arg2[%c0_3, %c0_4] : memref<1x32xf32, #tpu.memory_space<vmem>>, vector<1x32xf32>
    %12 = vector.broadcast %11 : vector<1x32xf32> to vector<16x32xf32>
    %13 = arith.mulf %10, %12 : vector<16x32xf32>
    %c0_5 = arith.constant 0 : index
    %c0_6 = arith.constant 0 : index
    %14 = vector.load %arg3[%c0_5, %c0_6] : memref<16x32xf32, #tpu.memory_space<vmem>>, vector<16x32xf32>
    tpu.vector_store %arg3[%c0_5, %c0_6], %13 {strides = array<i32>} : memref<16x32xf32, #tpu.memory_space<vmem>>, vector<16x32xf32>,
    return
  }
  func.func @transform_0(%arg0: i32) -> (i32, i32) {
    %c0_i32 = arith.constant 0 : i32
    %c0_i32_0 = arith.constant 0 : i32
    return %arg0, %c0_i32 : i32, i32
  }
  func.func @transform_1(%arg0: i32) -> (i32, i32) {
    %c0_i32 = arith.constant 0 : i32
    %c0_i32_0 = arith.constant 0 : i32
    %c0_i32_1 = arith.constant 0 : i32
    return %c0_i32, %c0_i32_0 : i32, i32
  }
  func.func @transform_2(%arg0: i32) -> (i32, i32) {
    %c0_i32 = arith.constant 0 : i32
    %c0_i32_0 = arith.constant 0 : i32
    return %arg0, %c0_i32 : i32, i32
  }
}

</mosaic_0001>

<llo_original>
// kernel: tpu_custom_call.1
$region0: #{tpu_custom_call.1}
  #allocation0 [shape = 'u32[]', space=smem, size = 0x4, offset = 0x4, fixed_abs, tag = 'smem constant byte address 0x4 - core index']
  #allocation1 [shape = 'u32[144,128]{1,0:T(1,128)}', space=vmem, size = 0x12000, scoped, tag = 'internal scratch']
  %s0 = inlined_call_operand.hbm [shape: f32[16,32], index: 0, kind: input, shape index: {}]
  %s1 = inlined_call_operand.vmem [shape: f32[1,32], index: 1, kind: input, shape index: {}]
  %s2 = inlined_call_operand.hbm [shape: f32[16,32], index: 2, kind: output, shape index: {}]
  %s3 = sld [smem:[#allocation0]]
  $region22: #{tpu_custom_call.1} parent=0
    _
  %s5 = ssub.s32 1, %s3
  %s6 = scalar_select 0, %s5, %s3
  $region1: #{tpu_custom_call.1} parent=0
    #allocation2 [shape = 'u8[8192]{0}', space=vmem, size = 0x2000, scoped, tag = 'input window, operand 0, single buffered']
    #allocation3 [shape = 's32[1]{0}', space=sflag, size = 0x4, scoped, tag = 'scoped memory for tpu_custom_call.1']
    #allocation4 [shape = 's32[1]{0}', space=sflag, size = 0x4, scoped, tag = 'scoped memory for tpu_custom_call.1']
    #allocation5 [shape = 'u8[8192]{0}', space=vmem, size = 0x2000, scoped, tag = 'output window, operand 0, single buffered']
    %7 = vsyncpa [#allocation3], 0
    %8 = vsyncpa [#allocation4], 0
    // Predicated region
    $region2: #{tpu_custom_call.1} parent=1 // pred_check
      _
    $region3: #{tpu_custom_call.1} parent=1 // pred_check_branch
      %10 = sbr.rel (0) target = $region5
    $region4: #{tpu_custom_call.1} parent=1 // pred_region
      %s12 = ssub.s32 256, 256
      %13 = vsyncadd [#allocation3], %s12
      %s14 = sshll.u32 [#allocation2], 4
      %s15 = int_to_ptr.vmem [resolvable:$true] %s14
      %20 = dma.hbm_to_vmem [thread:$0]  %s0, 256, %s15, [#allocation3], 128, 128, 8
    $region5: #{tpu_custom_call.1} parent=1 // pred_fallthru
      _
    // Predicated region
    $region6: #{tpu_custom_call.1} parent=1 // pred_check
      _
    $region7: #{tpu_custom_call.1} parent=1 // pred_check_branch
      %22 = sbr.rel (0) target = $region9
    $region8: #{tpu_custom_call.1} parent=1 // pred_region
      _
    $region9: #{tpu_custom_call.1} parent=1 // pred_fallthru
      _
    // Predicated region
    $region10: #{tpu_custom_call.1} parent=1 // pred_check
      _
    $region11: #{tpu_custom_call.1} parent=1 // pred_check_branch
      %24 = sbr.rel (0) target = $region13
    $region12: #{tpu_custom_call.1} parent=1 // pred_region
      %25 = dma.done [#allocation3], 256
    $region13: #{tpu_custom_call.1} parent=1 // pred_fallthru
      _
    %v26 = vld [vmem:[#allocation2] sm:$0xff]
    %v27 = vld [vmem:[#allocation2 + $0x8] sm:$0xff]
    %v28 = vmul.f32 %v26, %v26
    %v29 = vmul.f32 %v27, %v27
    %vm30 = vcmask 261120
    %v31 = vsel %vm30, %v28, 0.0
    %32 = vadd.xlane.f32.xlu0 %v31
    %v33 = vpop.xlane.xlu0 %32
    %v34 = vsel %vm30, %v29, 0.0
    %35 = vadd.xlane.f32.xlu0 %v34
    %v36 = vpop.xlane.xlu0 %35
    %v37 = vadd.f32 %v33, 1e-05
    %v38 = vadd.f32 %v36, 1e-05
    %v39 = vrcp.pop 32.0
    %v40 = vmul.f32 %v37, %v39
    %v41 = vmul.f32 %v38, %v39
    %v42 = vrsqrt.pop %v40
    %v43 = vrsqrt.pop %v41
    %v44 = vmul.f32 %v26, %v42
    %v45 = vmul.f32 %v27, %v43
    %v46 = vld [vmem:[%s1] sm:$0x1]
    %v48 = vlaneseq
    %v49 = vshrl.u32 %v48, 7
    %v50 = vsub.s32 0, %v49
    %v51 = vrot.slane %v46, %v50
    %v53 = vmul.f32 %v44, %v51
    %v54 = vmul.f32 %v45, %v51
    %55 = vst.msk [vmem:[#allocation5] sm:$0xff] %vm30, %v53
    %56 = vst.msk [vmem:[#allocation5 + $0x8] sm:$0xff] %vm30, %v54
    // Predicated region
    $region14: #{tpu_custom_call.1} parent=1 // pred_check
      _
    $region15: #{tpu_custom_call.1} parent=1 // pred_check_branch
      %58 = sbr.rel (0) target = $region17
    $region16: #{tpu_custom_call.1} parent=1 // pred_region
      %s60 = ssub.s32 256, 256
      %61 = vsyncadd [#allocation4], %s60
      %s62 = sshll.u32 [#allocation5], 4
      %s63 = int_to_ptr.vmem [resolvable:$true] %s62
      %68 = dma.vmem_to_hbm [thread:$0]  %s63, 256, %s2, [#allocation4], 128, 128, 8
    $region17: #{tpu_custom_call.1} parent=1 // pred_fallthru
      _
    // Predicated region
    $region18: #{tpu_custom_call.1} parent=1 // pred_check
      _
    $region19: #{tpu_custom_call.1} parent=1 // pred_check_branch
      %70 = sbr.rel (0) target = $region21
    $region20: #{tpu_custom_call.1} parent=1 // pred_region
      %71 = dma.done [#allocation4], 256
    $region21: #{tpu_custom_call.1} parent=1 // pred_fallthru
      _
    %72 = vsyncpa [#allocation3], 1
    %73 = vsyncpa [#allocation4], 1

</llo_original>
